<compile_context>
chip_gen: v5e
topology: v5e:2x2
jax: 0.10.0
libtpu: 0.0.40
codegen_flags: <defaults>
</compile_context>

<pallas_src>
import functools

import jax
import jax.numpy as jnp
from jax.experimental import pallas as pl
from jax.experimental.pallas import tpu as pltpu

_VMEM_LIMIT = 16 * 1024 * 1024


def _round_up(x, m):
    return ((x + m - 1) // m) * m


# ---------------- Pallas kernels --------------------------------------------
def _gemm_fused_kernel(a_ref, b_ref, isc_ref, ish_ref, osc_ref, osh_ref, o_ref,
                       *, prologue_relu, epilogue_relu):
    """out = epilogue( prologue(A) @ B ); prologue/epilogue are per-column affines."""
    a = a_ref[...] * isc_ref[...] + ish_ref[...]           # f32 VPU (v5e-safe)
    if prologue_relu:
        a = jnp.maximum(a, 0.0)
    acc = jnp.dot(a.astype(jnp.bfloat16), b_ref[...],
                  preferred_element_type=jnp.float32)       # bf16 MXU, f32 accumulate
    out = acc * osc_ref[...] + osh_ref[...]
    if epilogue_relu:
        out = jnp.maximum(out, 0.0)
    o_ref[...] = out


def _maxpool_kernel(x_ref, o_ref):
    acc = x_ref[0]
    for i in range(1, x_ref.shape[0]):
        acc = jnp.maximum(acc, x_ref[i])
    o_ref[...] = acc


def _avgpool_kernel(x_ref, o_ref):
    acc = x_ref[0]
    for i in range(1, x_ref.shape[0]):
        acc = acc + x_ref[i]
    o_ref[...] = acc * (1.0 / x_ref.shape[0])


# ---------------- cached pallas_call builders (compile once per shape) ------
@functools.lru_cache(maxsize=None)
def _build_gemm(m_pad, k_pad, n_pad, prologue_relu, epilogue_relu):
    tm = 256 if (m_pad > 256 and m_pad % 256 == 0) else m_pad
    tn = 256 if (n_pad > 256 and n_pad % 256 == 0) else n_pad
    grid = (m_pad // tm, n_pad // tn)
    kernel = functools.partial(_gemm_fused_kernel,
                               prologue_relu=prologue_relu,
                               epilogue_relu=epilogue_relu)
    call = pl.pallas_call(
        kernel,
        out_shape=jax.ShapeDtypeStruct((m_pad, n_pad), jnp.float32),
        grid=grid,
        in_specs=[
            pl.BlockSpec((tm, k_pad), lambda i, j: (i, 0)),     # A (f32)
            pl.BlockSpec((k_pad, tn), lambda i, j: (0, j)),     # B (bf16, prepacked)
            pl.BlockSpec((1, k_pad), lambda i, j: (0, 0)),      # prologue scale
            pl.BlockSpec((1, k_pad), lambda i, j: (0, 0)),      # prologue shift
            pl.BlockSpec((1, tn), lambda i, j: (0, j)),         # epilogue scale
            pl.BlockSpec((1, tn), lambda i, j: (0, j)),         # epilogue shift
        ],
        out_specs=pl.BlockSpec((tm, tn), lambda i, j: (i, j)),
        compiler_params=pltpu.CompilerParams(
            dimension_semantics=("parallel", "parallel"),
            vmem_limit_bytes=_VMEM_LIMIT),
    )
    return jax.jit(call)


@functools.lru_cache(maxsize=None)
def _build_pool(taps, m, c, op):
    kernel = _maxpool_kernel if op == "max" else _avgpool_kernel
    call = pl.pallas_call(
        kernel,
        out_shape=jax.ShapeDtypeStruct((m, c), jnp.float32),
        grid=(1,),
        in_specs=[pl.BlockSpec((taps, m, c), lambda i: (0, 0, 0))],
        out_specs=pl.BlockSpec((m, c), lambda i: (0, 0)),
        compiler_params=pltpu.CompilerParams(
            dimension_semantics=("arbitrary",),
            vmem_limit_bytes=_VMEM_LIMIT),
    )
    return jax.jit(call)


# ---------------- op wrappers ------------------------------------------------
def gemm_fused(a, g):
    """a:(M,K) f32  x  packed layer `g`  ->  (M, g['n']) f32."""
    m, k = a.shape
    k_pad, n_pad = g["b"].shape
    assert k == g["k"], (k, g["k"])
    m_pad = _round_up(m, 8)
    if (m_pad, k_pad) != (m, k):
        a = jnp.pad(a, ((0, m_pad - m), (0, k_pad - k)))
    fn = _build_gemm(m_pad, k_pad, n_pad, g["pr"], g["er"])
    out = fn(a, g["b"], g["isc"], g["ish"], g["osc"], g["osh"])
    return out[:m, :g["n"]]


def _im2col(x, kh, kw, stride, padding):
    n, h, w, c = x.shape
    if padding:
        x = jnp.pad(x, ((0, 0), (padding, padding), (padding, padding), (0, 0)))
    oh = (h + 2 * padding - kh) // stride + 1
    ow = (w + 2 * padding - kw) // stride + 1
    taps = []
    for dh in range(kh):
        for dw in range(kw):
            taps.append(x[:, dh:dh + stride * (oh - 1) + 1:stride,
                             dw:dw + stride * (ow - 1) + 1:stride, :])
    a = jnp.stack(taps, axis=3).reshape(n * oh * ow, kh * kw * c)
    return a, oh, ow


def maxpool_3x3_s2_p1(x):
    n, h, w, c = x.shape
    xp = jnp.pad(x, ((0, 0), (1, 1), (1, 1), (0, 0)), constant_values=-1e30)
    oh = (h + 2 - 3) // 2 + 1
    ow = (w + 2 - 3) // 2 + 1
    wins = [xp[:, dh:dh + 2 * (oh - 1) + 1:2, dw:dw + 2 * (ow - 1) + 1:2, :]
            for dh in range(3) for dw in range(3)]
    a = jnp.stack(wins, axis=0).reshape(9, n * oh * ow, c)   # lane-dense (taps, M, C)
    return _build_pool(9, n * oh * ow, c, "max")(a).reshape(n, oh, ow, c)


def avgpool_2x2(x):
    n, h, w, c = x.shape
    oh, ow = h // 2, w // 2
    a = x.reshape(n, oh, 2, ow, 2, c).transpose(2, 4, 0, 1, 3, 5)
    a = a.reshape(4, n * oh * ow, c)                          # lane-dense (taps, M, C)
    return _build_pool(4, n * oh * ow, c, "avg")(a).reshape(n, oh, ow, c)


# ---------------- deterministic parameter construction ----------------------
class ParamGen:
    def __init__(self, seed=0):
        self.key = jax.random.PRNGKey(seed)

    def _next(self):
        self.key, sub = jax.random.split(self.key)
        return sub

    def conv(self, o, i, kh, kw):
        fan_in = i * kh * kw
        std = (2.0 / fan_in) ** 0.5
        return std * jax.random.normal(self._next(), (o, i, kh, kw), jnp.float32)

    def bn(self, c):
        return dict(
            gamma=1.0 + 0.05 * jax.random.normal(self._next(), (c,), jnp.float32),
            beta=0.05 * jax.random.normal(self._next(), (c,), jnp.float32),
            mean=0.05 * jax.random.normal(self._next(), (c,), jnp.float32),
            var=1.0 + 0.05 * jnp.abs(jax.random.normal(self._next(), (c,), jnp.float32)),
        )

    def linear(self, in_f, out_f):
        std = (1.0 / in_f) ** 0.5
        w = std * jax.random.normal(self._next(), (out_f, in_f), jnp.float32)
        b = 0.01 * jax.random.normal(self._next(), (out_f,), jnp.float32)
        return w, b


def build_densenet121_params(seed=0, emb_size=256, n_classes=10):
    pg = ParamGen(seed)
    p = {}
    growth, bn_size = 32, 4
    block_cfg = (6, 12, 24, 16)

    p["conv0"] = pg.conv(64, 3, 7, 7)
    p["norm0"] = pg.bn(64)

    num_features = 64
    blocks = []
    for b, n_layers in enumerate(block_cfg):
        layers = []
        for i in range(n_layers):
            in_ch = num_features + i * growth
            layers.append(dict(
                norm1=pg.bn(in_ch),
                conv1=pg.conv(bn_size * growth, in_ch, 1, 1),
                norm2=pg.bn(bn_size * growth),
                conv2=pg.conv(growth, bn_size * growth, 3, 3),
            ))
        blocks.append(layers)
        num_features += n_layers * growth
        if b != 3:
            p[f"trans{b + 1}"] = dict(
                norm=pg.bn(num_features),
                conv=pg.conv(num_features // 2, num_features, 1, 1),
            )
            num_features //= 2
    p["blocks"] = blocks
    p["norm5"] = pg.bn(num_features)                 # BN(1024)
    p["fc1_w"], p["fc1_b"] = pg.linear(1024, emb_size)
    p["cls_w"], p["cls_b"] = pg.linear(emb_size, n_classes)
    return p


# ---------------- one-time weight packing (transpose + pad + bf16 cast) -----
def _bn_fold(bn, eps=1e-5):
    scale = bn["gamma"] / jnp.sqrt(bn["var"] + eps)
    shift = bn["beta"] - bn["mean"] * scale
    return scale, shift


def _conv_to_kn(w):
    o, i, kh, kw = w.shape
    return jnp.transpose(w, (2, 3, 1, 0)).reshape(kh * kw * i, o)


def _pack_gemm(w_kn, in_affine=None, out_affine=None,
               prologue_relu=False, epilogue_relu=False):
    k, n = w_kn.shape
    k_pad, n_pad = _round_up(k, 128), _round_up(n, 128)
    b = jnp.pad(w_kn.astype(jnp.float32),
                ((0, k_pad - k), (0, n_pad - n))).astype(jnp.bfloat16)

    def _vec(aff, dim, dim_pad):
        if aff is None:
            return (jnp.ones((1, dim_pad), jnp.float32),
                    jnp.zeros((1, dim_pad), jnp.float32))
        s = jnp.pad(aff[0].astype(jnp.float32).reshape(1, dim),
                    ((0, 0), (0, dim_pad - dim)))
        t = jnp.pad(aff[1].astype(jnp.float32).reshape(1, dim),
                    ((0, 0), (0, dim_pad - dim)))
        return s, t

    isc, ish = _vec(in_affine, k, k_pad)
    osc, osh = _vec(out_affine, n, n_pad)
    return dict(b=b, isc=isc, ish=ish, osc=osc, osh=osh,
                k=k, n=n, pr=prologue_relu, er=epilogue_relu)


def pack_densenet121_params(p):
    pk = {}
    # stem: conv0 with norm0+ReLU folded as the epilogue
    pk["conv0"] = _pack_gemm(_conv_to_kn(p["conv0"]),
                             out_affine=_bn_fold(p["norm0"]),
                             epilogue_relu=True)
    blocks = []
    for b, layers in enumerate(p["blocks"]):
        packed_layers = []
        for lp in layers:
            # norm1+ReLU prologue -> 1x1 conv -> norm2+ReLU epilogue (one kernel)
            g1 = _pack_gemm(_conv_to_kn(lp["conv1"]),
                            in_affine=_bn_fold(lp["norm1"]),
                            out_affine=_bn_fold(lp["norm2"]),
                            prologue_relu=True, epilogue_relu=True)
            # 3x3 conv, plain GEMM (input is already activated)
            g2 = _pack_gemm(_conv_to_kn(lp["conv2"]))
            packed_layers.append(dict(g1=g1, g2=g2))
        blocks.append(packed_layers)
        if b != 3:
            tp = p[f"trans{b + 1}"]
            pk[f"trans{b + 1}"] = _pack_gemm(_conv_to_kn(tp["conv"]),
                                             in_affine=_bn_fold(tp["norm"]),
                                             prologue_relu=True)
    pk["blocks"] = blocks
    # norm5 folded as the prologue of fc1; Linear bias folded as epilogue shift
    pk["fc1"] = _pack_gemm(p["fc1_w"].T,
                           in_affine=_bn_fold(p["norm5"]),
                           out_affine=(jnp.ones_like(p["fc1_b"]), p["fc1_b"]))
    pk["cls"] = _pack_gemm(p["cls_w"].T,
                           out_affine=(jnp.ones_like(p["cls_b"]), p["cls_b"]))
    return pk


# ---------------- forward pass (matches DenseNet121.forward) ----------------
def densenet121_forward(x_nchw, pk, return_embs=False):
    # encoder = densenet121.features (conv0 ... norm5), NO final ReLU / pooling
    x = jnp.transpose(x_nchw, (0, 2, 3, 1)).astype(jnp.float32)   # NCHW -> NHWC
    n = x.shape[0]

    # stem: conv0 7x7/s2 (norm0+ReLU fused), then 3x3/s2 maxpool
    a, oh, ow = _im2col(x, 7, 7, stride=2, padding=3)
    x = gemm_fused(a, pk["conv0"]).reshape(n, oh, ow, -1)
    x = maxpool_3x3_s2_p1(x)

    for b in range(4):
        feats = x
        for layer in pk["blocks"][b]:
            nb, h, w, c = feats.shape
            # norm1+ReLU -> conv1(1x1) -> norm2+ReLU : single fused GEMM
            y = gemm_fused(feats.reshape(nb * h * w, c), layer["g1"])
            y = y.reshape(nb, h, w, -1)
            # conv2 3x3 pad 1 (zero padding is valid: input is post-ReLU)
            a, oh, ow = _im2col(y, 3, 3, stride=1, padding=1)
            y = gemm_fused(a, layer["g2"]).reshape(nb, oh, ow, -1)
            feats = jnp.concatenate([feats, y], axis=-1)
        x = feats
        if b != 3:
            nb, h, w, c = x.shape
            # transition: norm+ReLU (prologue) -> 1x1 conv, then 2x2 avgpool
            x = gemm_fused(x.reshape(nb * h * w, c), pk[f"trans{b + 1}"])
            x = x.reshape(nb, h, w, -1)
            x = avgpool_2x2(x)

    # norm5 is folded into the fc1 prologue (no ReLU, matching the encoder cut)
    z = gemm_fused(x.reshape(n, -1), pk["fc1"])      # fc1: 1024 -> emb_size
    logits = gemm_fused(z, pk["cls"])                # cls: emb_size -> n_classes
    if return_embs:
        return logits, z
    return logits


# ---------------- main -------------------------------------------------------
if __name__ == "__main__":
    raw_params = build_densenet121_params(seed=0)
    params = pack_densenet121_params(raw_params)     # one-time weight packing
    # CIFAR-10-style input (PyTorch NCHW); 32x32 makes the encoder output 1x1x1024.
    x = jax.random.normal(jax.random.PRNGKey(0), (2, 3, 32, 32), jnp.float32)
    logits = densenet121_forward(x, params)
    logits = jax.block_until_ready(logits)
    assert logits.shape == (2, 10), logits.shape
    assert bool(jnp.all(jnp.isfinite(logits)))
    print("KERNEL_OK")
</pallas_src>

<mosaic_0001>
module attributes {stable_mosaic.version = 11 : i64} {
  func.func @_gemm_fused_kernel(%arg0: i32, %arg1: i32, %arg2: memref<256x256xf32, #tpu.memory_space<vmem>>, %arg3: memref<256x128xbf16, #tpu.memory_space<vmem>>, %arg4: memref<1x256xf32, #tpu.memory_space<vmem>>, %arg5: memref<1x256xf32, #tpu.memory_space<vmem>>, %arg6: memref<1x128xf32, #tpu.memory_space<vmem>>, %arg7: memref<1x128xf32, #tpu.memory_space<vmem>>, %arg8: memref<256x128xf32, #tpu.memory_space<vmem>>) attributes {dimension_semantics = [#tpu.dimension_semantics<parallel>, #tpu.dimension_semantics<parallel>], iteration_bounds = array<i64: 2, 1>, scalar_prefetch = 0 : i64, scratch_operands = 0 : i64, tpu.core_type = #tpu.core_type<tc>, window_params = [{transform_indices = @transform_0, window_bounds = array<i64: 256, 256>}, {transform_indices = @transform_1, window_bounds = array<i64: 256, 128>}, {pipeline_mode = #tpu.pipeline_mode<synchronous>, transform_indices = @transform_2, window_bounds = array<i64: 1, 256>}, {pipeline_mode = #tpu.pipeline_mode<synchronous>, transform_indices = @transform_3, window_bounds = array<i64: 1, 256>}, {transform_indices = @transform_4, window_bounds = array<i64: 1, 128>}, {transform_indices = @transform_5, window_bounds = array<i64: 1, 128>}, {transform_indices = @transform_6, window_bounds = array<i64: 256, 128>}]} {
    %c0 = arith.constant 0 : index
    %c0_0 = arith.constant 0 : index
    %0 = vector.load %arg2[%c0, %c0_0] : memref<256x256xf32, #tpu.memory_space<vmem>>, vector<256x256xf32>
    %c0_1 = arith.constant 0 : index
    %c0_2 = arith.constant 0 : index
    %1 = vector.load %arg4[%c0_1, %c0_2] : memref<1x256xf32, #tpu.memory_space<vmem>>, vector<1x256xf32>
    %2 = vector.broadcast %1 : vector<1x256xf32> to vector<256x256xf32>
    %3 = arith.mulf %0, %2 : vector<256x256xf32>
    %c0_3 = arith.constant 0 : index
    %c0_4 = arith.constant 0 : index
    %4 = vector.load %arg5[%c0_3, %c0_4] : memref<1x256xf32, #tpu.memory_space<vmem>>, vector<1x256xf32>
    %5 = vector.broadcast %4 : vector<1x256xf32> to vector<256x256xf32>
    %6 = arith.addf %3, %5 : vector<256x256xf32>
    %7 = arith.truncf %6 : vector<256x256xf32> to vector<256x256xbf16>
    %c0_5 = arith.constant 0 : index
    %c0_6 = arith.constant 0 : index
    %8 = vector.load %arg3[%c0_5, %c0_6] : memref<256x128xbf16, #tpu.memory_space<vmem>>, vector<256x128xbf16>
    %cst = arith.constant dense<0.000000e+00> : vector<256x128xf32>
    %9 = tpu.matmul %7, %8, %cst {dimension_numbers = #tpu.dot_dimension_numbers<[1], [0], [0], [1], [0, 0, 1, 1], [], []>} : vector<256x256xbf16>, vector<256x128xbf16>, vector<256x128xf32> -> vector<256x128xf32>
    %c0_7 = arith.constant 0 : index
    %c0_8 = arith.constant 0 : index
    %10 = vector.load %arg6[%c0_7, %c0_8] : memref<1x128xf32, #tpu.memory_space<vmem>>, vector<1x128xf32>
    %11 = vector.broadcast %10 : vector<1x128xf32> to vector<256x128xf32>
    %12 = arith.mulf %9, %11 : vector<256x128xf32>
    %c0_9 = arith.constant 0 : index
    %c0_10 = arith.constant 0 : index
    %13 = vector.load %arg7[%c0_9, %c0_10] : memref<1x128xf32, #tpu.memory_space<vmem>>, vector<1x128xf32>
    %14 = vector.broadcast %13 : vector<1x128xf32> to vector<256x128xf32>
    %15 = arith.addf %12, %14 : vector<256x128xf32>
    %cst_11 = arith.constant 0.000000e+00 : f32
    %16 = vector.broadcast %cst_11 : f32 to vector<256x128xf32>
    %17 = arith.maximumf %15, %16 : vector<256x128xf32>
    %c0_12 = arith.constant 0 : index
    %c0_13 = arith.constant 0 : index
    %18 = vector.load %arg8[%c0_12, %c0_13] : memref<256x128xf32, #tpu.memory_space<vmem>>, vector<256x128xf32>
    tpu.vector_store %arg8[%c0_12, %c0_13], %17 {strides = array<i32>} : memref<256x128xf32, #tpu.memory_space<vmem>>, vector<256x128xf32>,
    return
  }
  func.func @transform_0(%arg0: i32, %arg1: i32) -> (i32, i32) {
    %c0_i32 = arith.constant 0 : i32
    %c0_i32_0 = arith.constant 0 : i32
    return %arg0, %c0_i32 : i32, i32
  }
  func.func @transform_1(%arg0: i32, %arg1: i32) -> (i32, i32) {
    %c0_i32 = arith.constant 0 : i32
    %c0_i32_0 = arith.constant 0 : i32
    return %c0_i32, %arg1 : i32, i32
  }
  func.func @transform_2(%arg0: i32, %arg1: i32) -> (i32, i32) {
    %c0_i32 = arith.constant 0 : i32
    %c0_i32_0 = arith.constant 0 : i32
    %c0_i32_1 = arith.constant 0 : i32
    return %c0_i32, %c0_i32_0 : i32, i32
  }
  func.func @transform_3(%arg0: i32, %arg1: i32) -> (i32, i32) {
    %c0_i32 = arith.constant 0 : i32
    %c0_i32_0 = arith.constant 0 : i32
    %c0_i32_1 = arith.constant 0 : i32
    return %c0_i32, %c0_i32_0 : i32, i32
  }
  func.func @transform_4(%arg0: i32, %arg1: i32) -> (i32, i32) {
    %c0_i32 = arith.constant 0 : i32
    %c0_i32_0 = arith.constant 0 : i32
    return %c0_i32, %arg1 : i32, i32
  }
  func.func @transform_5(%arg0: i32, %arg1: i32) -> (i32, i32) {
    %c0_i32 = arith.constant 0 : i32
    %c0_i32_0 = arith.constant 0 : i32
    return %c0_i32, %arg1 : i32, i32
  }
  func.func @transform_6(%arg0: i32, %arg1: i32) -> (i32, i32) {
    %c0_i32 = arith.constant 0 : i32
    return %arg0, %arg1 : i32, i32
  }
}

</mosaic_0001>

<llo_original>
// kernel: tpu_custom_call.1
$region0: #{tpu_custom_call.1}
  #allocation0 [shape = 'u32[]', space=smem, size = 0x4, offset = 0x4, fixed_abs, tag = 'smem constant byte address 0x4 - core index']
  #allocation1 [shape = 'u32[72,128]{1,0:T(1,128)}', space=vmem, size = 0x9000, scoped, tag = 'internal scratch']
  %s0 = inlined_call_operand.hbm [shape: f32[512,256], index: 0, kind: input, shape index: {}]
  %s1 = inlined_call_operand.hbm [shape: bf16[256,128], index: 1, kind: input, shape index: {}]
  %s2 = inlined_call_operand.hbm [shape: f32[1,256], index: 2, kind: input, shape index: {}]
  %s3 = inlined_call_operand.vmem [shape: f32[1,256], index: 3, kind: input, shape index: {}]
  %s4 = inlined_call_operand.vmem [shape: f32[1,128], index: 4, kind: input, shape index: {}]
  %s5 = inlined_call_operand.vmem [shape: f32[1,128], index: 5, kind: input, shape index: {}]
  %s6 = inlined_call_operand.hbm [shape: f32[512,128], index: 6, kind: output, shape index: {}]
  %s7 = sld [smem:[#allocation0]]
  $region69: #{tpu_custom_call.1} parent=0
    _
  %s9 = ssub.s32 1, %s7
  %s10 = scalar_select 0, %s9, %s7
  $region1: #{tpu_custom_call.1} parent=0
    #allocation2 [shape = 'u8[524288]{0}', space=vmem, size = 0x80000, scoped, tag = 'input window, operand 0']
    #allocation3 [shape = 's32[2]{0}', space=sflag, size = 0x8, scoped, tag = 'scoped memory for tpu_custom_call.1']
    #allocation4 [shape = 's32[2]{0}', space=sflag, size = 0x8, scoped, tag = 'scoped memory for tpu_custom_call.1']
    #allocation5 [shape = 'u8[65536]{0}', space=vmem, size = 0x10000, scoped, tag = 'input window, operand 1, single buffered']
    #allocation6 [shape = 's32[1]{0}', space=sflag, size = 0x4, scoped, tag = 'scoped memory for tpu_custom_call.1']
    #allocation7 [shape = 'u8[1024]{0}', space=vmem, size = 0x400, scoped, tag = 'input window, operand 2, single buffered']
    #allocation8 [shape = 'u8[262144]{0}', space=vmem, size = 0x40000, scoped, tag = 'output window, operand 0']
    %11 = vsyncpa [#allocation3], 0
    %s12 = scalar_lea.sflag [#allocation3], 1
    %13 = vsyncpa %s12, 0
    %14 = vsyncpa [#allocation6], 0
    %15 = vsyncpa [#allocation4], 0
    %s16 = scalar_lea.sflag [#allocation4], 1
    %17 = vsyncpa %s16, 0
    loop: start=0, step=1, limit=4
    $region2: #{tpu_custom_call.1} parent=1 // loop_pre_header
      _
    $region3: #{tpu_custom_call.1} parent=1 // loop_header
      %s19 = sphi 0, %s23
      %p20 = scmp.ge.s32.totalorder %s19, 4
      %s26 = sphi 0, %s38
      %s27 = sphi 0, %s34
      %s28 = sphi 0, %s26
      %s29 = sphi 0, %s27
      %s30 = sphi 0, %s28
      %s31 = sphi 0, %s29
      %s41 = sphi 0, %s43
      %s44 = sphi 0, %s41
      %s45 = sphi 0, %s44
      %s61 = sphi 0, %s45
      %s67 = sphi 0, %s69
      %s70 = sphi 0, %s67
      %s71 = sphi 0, %s70
      %s87 = sphi 0, %s71
      %s91 = sphi 0, %s91
      %s93 = sphi 0, %s91
      %s94 = sphi 0, %s93
      %s108 = sphi 0, %s94
      %s112 = sphi 0, %s112
      %s114 = sphi 0, %s112
      %s115 = sphi 0, %s114
      %s129 = sphi 0, %s115
      %s135 = sphi 0, %s137
      %s138 = sphi 0, %s135
      %s139 = sphi 0, %s138
      %s155 = sphi 0, %s139
      %s161 = sphi 0, %s163
      %s164 = sphi 0, %s161
      %s165 = sphi 0, %s164
      %s181 = sphi 0, %s165
      %s189 = sphi 0, %s191
      %s192 = sphi 0, %s189
      %s193 = sphi 0, %s192
      %s209 = sphi 0, %s193
    $region4: #{tpu_custom_call.1} parent=1 // loop_header_branch
      %22 = sbr.rel (%p20) target = $region8
    $region5: #{tpu_custom_call.1} parent=1 // loop_body
      %s24 = ssub.s32 %s19, 1
      %s25 = ssub.s32 %s19, 2
      %s32 = sadd.s32 1, %s27
      %p33 = scmp.ge.s32.totalorder %s32, 1
      %s34 = scalar_select %p33, 0, %s32
      %s35 = sadd.s32 1, %s26
      %s36 = scalar_select %p33, %s35, %s26
      %p37 = scmp.ge.s32.totalorder %s36, 2
      %s38 = scalar_select %p37, 0, %s36
      %s39 = ssub.s32 %s26, %s38
      %p40 = scmp.eq.s32.totalorder %s39, 0
      %s42 = sadd.s32 %s41, 1
      %s43 = scalar_select %p40, %s41, %s42
      %p46 = pneg %p40
      %p47 = scmp.eq.s32.totalorder %s19, 1
      %p48 = por %p46, %p47
      %p49 = scmp.ne.s32.totalorder %s41, %s44
      %p50 = scmp.eq.s32.totalorder %s19, 0
      %p51 = por %p49, %p50
      %p52 = scmp.ne.s32.totalorder %s41, %s44
      %p53 = scmp.eq.s32.totalorder %s24, 1
      %p54 = por %p52, %p53
      %p55 = scmp.ne.s32.totalorder %s44, %s45
      %p56 = scmp.eq.s32.totalorder %s24, 0
      %p57 = por %p55, %p56
      %p58 = scmp.ne.s32.totalorder %s44, %s45
      %p59 = scmp.eq.s32.totalorder %s25, 1
      %p60 = por %p58, %p59
      %p62 = scmp.ne.s32.totalorder %s45, %s61
      %p63 = scmp.eq.s32.totalorder %s25, 0
      %p64 = por %p62, %p63
      %s65 = ssub.s32 %s27, %s34
      %p66 = scmp.eq.s32.totalorder %s65, 0
      %s68 = sadd.s32 %s67, 1
      %s69 = scalar_select %p66, %s67, %s68
      %p72 = pneg %p66
      %p73 = scmp.eq.s32.totalorder %s19, 1
      %p74 = por %p72, %p73
      %p75 = scmp.ne.s32.totalorder %s67, %s70
      %p76 = scmp.eq.s32.totalorder %s19, 0
      %p77 = por %p75, %p76
      %p78 = scmp.ne.s32.totalorder %s67, %s70
      %p79 = scmp.eq.s32.totalorder %s24, 1
      %p80 = por %p78, %p79
      %p81 = scmp.ne.s32.totalorder %s70, %s71
      %p82 = scmp.eq.s32.totalorder %s24, 0
      %p83 = por %p81, %p82
      %p84 = scmp.ne.s32.totalorder %s70, %s71
      %p85 = scmp.eq.s32.totalorder %s25, 1
      %p86 = por %p84, %p85
      %p88 = scmp.ne.s32.totalorder %s71, %s87
      %p89 = scmp.eq.s32.totalorder %s25, 0
      %p90 = por %p88, %p89
      %s92 = sadd.s32 %s91, 1
      %p95 = scmp.eq.s32.totalorder %s19, 1
      %p96 = scmp.ne.s32.totalorder %s91, %s93
      %p97 = scmp.eq.s32.totalorder %s19, 0
      %p98 = por %p96, %p97
      %p99 = scmp.ne.s32.totalorder %s91, %s93
      %p100 = scmp.eq.s32.totalorder %s24, 1
      %p101 = por %p99, %p100
      %p102 = scmp.ne.s32.totalorder %s93, %s94
      %p103 = scmp.eq.s32.totalorder %s24, 0
      %p104 = por %p102, %p103
      %p105 = scmp.ne.s32.totalorder %s93, %s94
      %p106 = scmp.eq.s32.totalorder %s25, 1
      %p107 = por %p105, %p106
      %p109 = scmp.ne.s32.totalorder %s94, %s108
      %p110 = scmp.eq.s32.totalorder %s25, 0
      %p111 = por %p109, %p110
      %s113 = sadd.s32 %s112, 1
      %p116 = scmp.eq.s32.totalorder %s19, 1
      %p117 = scmp.ne.s32.totalorder %s112, %s114
      %p118 = scmp.eq.s32.totalorder %s19, 0
      %p119 = por %p117, %p118
      %p120 = scmp.ne.s32.totalorder %s112, %s114
      %p121 = scmp.eq.s32.totalorder %s24, 1
      %p122 = por %p120, %p121
      %p123 = scmp.ne.s32.totalorder %s114, %s115
      %p124 = scmp.eq.s32.totalorder %s24, 0
      %p125 = por %p123, %p124
      %p126 = scmp.ne.s32.totalorder %s114, %s115
      %p127 = scmp.eq.s32.totalorder %s25, 1
      %p128 = por %p126, %p127
      %p130 = scmp.ne.s32.totalorder %s115, %s129
      %p131 = scmp.eq.s32.totalorder %s25, 0
      %p132 = por %p130, %p131
      %s133 = ssub.s32 %s27, %s34
      %p134 = scmp.eq.s32.totalorder %s133, 0
      %s136 = sadd.s32 %s135, 1
      %s137 = scalar_select %p134, %s135, %s136
      %p140 = pneg %p134
      %p141 = scmp.eq.s32.totalorder %s19, 1
      %p142 = por %p140, %p141
      %p143 = scmp.ne.s32.totalorder %s135, %s138
      %p144 = scmp.eq.s32.totalorder %s19, 0
      %p145 = por %p143, %p144
      %p146 = scmp.ne.s32.totalorder %s135, %s138
      %p147 = scmp.eq.s32.totalorder %s24, 1
      %p148 = por %p146, %p147
      %p149 = scmp.ne.s32.totalorder %s138, %s139
      %p150 = scmp.eq.s32.totalorder %s24, 0
      %p151 = por %p149, %p150
      %p152 = scmp.ne.s32.totalorder %s138, %s139
      %p153 = scmp.eq.s32.totalorder %s25, 1
      %p154 = por %p152, %p153
      %p156 = scmp.ne.s32.totalorder %s139, %s155
      %p157 = scmp.eq.s32.totalorder %s25, 0
      %p158 = por %p156, %p157
      %s159 = ssub.s32 %s27, %s34
      %p160 = scmp.eq.s32.totalorder %s159, 0
      %s162 = sadd.s32 %s161, 1
      %s163 = scalar_select %p160, %s161, %s162
      %p166 = pneg %p160
      %p167 = scmp.eq.s32.totalorder %s19, 1
      %p168 = por %p166, %p167
      %p169 = scmp.ne.s32.totalorder %s161, %s164
      %p170 = scmp.eq.s32.totalorder %s19, 0
      %p171 = por %p169, %p170
      %p172 = scmp.ne.s32.totalorder %s161, %s164
      %p173 = scmp.eq.s32.totalorder %s24, 1
      %p174 = por %p172, %p173
      %p175 = scmp.ne.s32.totalorder %s164, %s165
      %p176 = scmp.eq.s32.totalorder %s24, 0
      %p177 = por %p175, %p176
      %p178 = scmp.ne.s32.totalorder %s164, %s165
      %p179 = scmp.eq.s32.totalorder %s25, 1
      %p180 = por %p178, %p179
      %p182 = scmp.ne.s32.totalorder %s165, %s181
      %p183 = scmp.eq.s32.totalorder %s25, 0
      %p184 = por %p182, %p183
      %s185 = ssub.s32 %s26, %s38
      %s186 = ssub.s32 %s27, %s34
      %s187 = sor.u32 %s185, %s186
      %p188 = scmp.eq.s32.totalorder %s187, 0
      %s190 = sadd.s32 %s189, 1
      %s191 = scalar_select %p188, %s189, %s190
      %p194 = pneg %p188
      %p195 = scmp.eq.s32.totalorder %s19, 1
      %p196 = por %p194, %p195
      %p197 = scmp.ne.s32.totalorder %s189, %s192
      %p198 = scmp.eq.s32.totalorder %s19, 0
      %p199 = por %p197, %p198
      %p200 = scmp.ne.s32.totalorder %s189, %s192
      %p201 = scmp.eq.s32.totalorder %s24, 1
      %p202 = por %p200, %p201
      %p203 = scmp.ne.s32.totalorder %s192, %s193
      %p204 = scmp.eq.s32.totalorder %s24, 0
      %p205 = por %p203, %p204
      %p206 = scmp.ne.s32.totalorder %s192, %s193
      %p207 = scmp.eq.s32.totalorder %s25, 1
      %p208 = por %p206, %p207
      %p210 = scmp.ne.s32.totalorder %s193, %s209
      %p211 = scmp.eq.s32.totalorder %s25, 0
      %p212 = por %p210, %p211
      %p213 = scmp.le.s32.totalorder 1, %s19
      %p214 = scmp.lt.s32.totalorder %s19, 3
      %p215 = pnand %p213, %p214
      %p216 = pneg %p215
      // Predicated region
      $region9: #{tpu_custom_call.1} parent=5 // pred_check
        _
      $region10: #{tpu_custom_call.1} parent=5 // pred_check_branch
        %218 = sbr.rel (%p215) target = $region12
      $region11: #{tpu_custom_call.1} parent=5 // pred_region
        %s219 = ssub.s32 %s19, 1
        // Predicated region
        $region13: #{tpu_custom_call.1} parent=11 // pred_check
          %p220 = pneg %p83
        $region14: #{tpu_custom_call.1} parent=11 // pred_check_branch
          %222 = sbr.rel (%p220) target = $region16
        $region15: #{tpu_custom_call.1} parent=11 // pred_region
          %224 = vsyncadd [#allocation6], 0
          %s225 = smul.addr %s29, 4
          %s226 = scalar_lea.hbm %s1, %s225
          %s227 = sshll.u32 %s226, 4
          %s228 = int_to_ptr.hbm [resolvable:$true] %s227
          %s229 = sshll.u32 [#allocation5], 4
          %s230 = int_to_ptr.vmem [resolvable:$true] %s229
          %235 = dma.hbm_to_vmem [thread:$0]  %s228, 2048, %s230, [#allocation6], 64, 64, 4
        $region16: #{tpu_custom_call.1} parent=11 // pred_fallthru
          _
        // Predicated region
        $region17: #{tpu_custom_call.1} parent=11 // pred_check
          %p236 = pneg %p104
        $region18: #{tpu_custom_call.1} parent=11 // pred_check_branch
          %238 = sbr.rel (%p236) target = $region20
        $region19: #{tpu_custom_call.1} parent=11 // pred_region
          %240 = vsyncadd [#allocation6], 0
          %s242 = sshll.u32 %s2, 4
          %s243 = int_to_ptr.hbm [resolvable:$true] %s242
          %s244 = sshll.u32 [#allocation7], 4
          %s245 = int_to_ptr.vmem [resolvable:$true] %s244
          %247 = dma.hbm_to_vmem [thread:$0]  %s243, 32, %s245, [#allocation6]
        $region20: #{tpu_custom_call.1} parent=11 // pred_fallthru
          _
        // Predicated region
        $region21: #{tpu_custom_call.1} parent=11 // pred_check
          %p248 = pneg %p125
        $region22: #{tpu_custom_call.1} parent=11 // pred_check_branch
          %250 = sbr.rel (%p248) target = $region24
        $region23: #{tpu_custom_call.1} parent=11 // pred_region
          _
        $region24: #{tpu_custom_call.1} parent=11 // pred_fallthru
          _
        // Predicated region
        $region25: #{tpu_custom_call.1} parent=11 // pred_check
          %p251 = pneg %p151
        $region26: #{tpu_custom_call.1} parent=11 // pred_check_branch
          %253 = sbr.rel (%p251) target = $region28
        $region27: #{tpu_custom_call.1} parent=11 // pred_region
          %p254 = scmp.lt.s32.totalorder %s29, 0
          %s255 = scalar_select %p254, %s29, 0
          %s256 = scalar_lea.vmem %s4, %s255
        $region28: #{tpu_custom_call.1} parent=11 // pred_fallthru
          _
        // Predicated region
        $region29: #{tpu_custom_call.1} parent=11 // pred_check
          %p257 = pneg %p177
        $region30: #{tpu_custom_call.1} parent=11 // pred_check_branch
          %259 = sbr.rel (%p257) target = $region32
        $region31: #{tpu_custom_call.1} parent=11 // pred_region
          %p260 = scmp.lt.s32.totalorder %s29, 0
          %s261 = scalar_select %p260, %s29, 0
          %s262 = scalar_lea.vmem %s5, %s261
        $region32: #{tpu_custom_call.1} parent=11 // pred_fallthru
          _
      $region12: #{tpu_custom_call.1} parent=5 // pred_fallthru
        _
      %p263 = scmp.lt.s32.totalorder %s19, 2
      // Predicated region
      $region33: #{tpu_custom_call.1} parent=5 // pred_check
        %p264 = pneg %p263
      $region34: #{tpu_custom_call.1} parent=5 // pred_check_branch
        %266 = sbr.rel (%p264) target = $region36
      $region35: #{tpu_custom_call.1} parent=5 // pred_region
        // Predicated region
        $region37: #{tpu_custom_call.1} parent=35 // pred_check
          %p267 = pneg %p51
        $region38: #{tpu_custom_call.1} parent=35 // pred_check_branch
          %269 = sbr.rel (%p267) target = $region40
        $region39: #{tpu_custom_call.1} parent=35 // pred_region
          %s270 = sand.u32 %s41, 1
          %s271 = scalar_lea.sflag [#allocation3], %s270
          %s272 = sand.u32 %s41, 1
          %s273 = smul.addr %s272, 512
          %s274 = scalar_lea.vmem [#allocation2], %s273
          %s275 = smul.u32 32, %s26
          %277 = vsyncadd %s271, 0
          %s278 = smul.addr %s275, 2
          %s279 = smul.addr %s278, 8
          %s280 = scalar_lea.hbm %s0, %s279
          %s281 = sshll.u32 %s280, 4
          %s282 = int_to_ptr.hbm [resolvable:$true] %s281
          %s283 = sshll.u32 %s274, 4
          %s284 = int_to_ptr.vmem [resolvable:$true] %s283
          %289 = dma.hbm_to_vmem [thread:$0]  %s282, 8192, %s284, %s271, 256, 256, 16
        $region40: #{tpu_custom_call.1} parent=35 // pred_fallthru
          _
      $region36: #{tpu_custom_call.1} parent=5 // pred_fallthru
        _
      %p290 = scmp.le.s32.totalorder 1, %s19
      %p291 = scmp.lt.s32.totalorder %s19, 3
      %p292 = pnand %p290, %p291
      %p293 = pneg %p292
      // Predicated region
      $region41: #{tpu_custom_call.1} parent=5 // pred_check
        _
      $region42: #{tpu_custom_call.1} parent=5 // pred_check_branch
        %295 = sbr.rel (%p292) target = $region44
      $region43: #{tpu_custom_call.1} parent=5 // pred_region
        %s296 = ssub.s32 %s19, 1
        %s297 = sand.u32 %s44, 1
        %s298 = scalar_lea.sflag [#allocation3], %s297
        %s299 = sand.u32 %s44, 1
        %s300 = smul.addr %s299, 512
        %s301 = scalar_lea.vmem [#allocation2], %s300
        // Predicated region
        $region45: #{tpu_custom_call.1} parent=43 // pred_check
          %p302 = pneg %p57
        $region46: #{tpu_custom_call.1} parent=43 // pred_check_branch
          %304 = sbr.rel (%p302) target = $region48
        $region47: #{tpu_custom_call.1} parent=43 // pred_region
          %306 = dma.done %s298, 8192
        $region48: #{tpu_custom_call.1} parent=43 // pred_fallthru
          _
        // Predicated region
        $region49: #{tpu_custom_call.1} parent=43 // pred_check
          %p307 = pneg %p83
        $region50: #{tpu_custom_call.1} parent=43 // pred_check_branch
          %309 = sbr.rel (%p307) target = $region52
        $region51: #{tpu_custom_call.1} parent=43 // pred_region
          %311 = dma.done [#allocation6], 2048
        $region52: #{tpu_custom_call.1} parent=43 // pred_fallthru
          _
        // Predicated region
        $region53: #{tpu_custom_call.1} parent=43 // pred_check
          %p312 = pneg %p104
        $region54: #{tpu_custom_call.1} parent=43 // pred_check_branch
          %314 = sbr.rel (%p312) target = $region56
        $region55: #{tpu_custom_call.1} parent=43 // pred_region
          %316 = dma.done [#allocation6], 32
        $region56: #{tpu_custom_call.1} parent=43 // pred_fallthru
          _
        %s317 = sand.u32 %s44, 1
        %s318 = scalar_lea.sflag [#allocation3], %s317
        %s319 = sand.u32 %s44, 1
        %s320 = smul.addr %s319, 512
        %s321 = scalar_lea.vmem [#allocation2], %s320
        %p322 = pneg %p57
        %p323 = pneg %p54
        %p324 = pneg %p83
        %p325 = pneg %p80
        %p326 = pneg %p104
        %p327 = pneg %p101
        %p328 = pneg %p125
        %p329 = pneg %p122
        %p330 = scmp.lt.s32.totalorder %s29, 0
        %s331 = scalar_select %p330, %s29, 0
        %s332 = scalar_lea.vmem %s4, %s331
        %p333 = pneg %p151
        %p334 = pneg %p148
        %p335 = scmp.lt.s32.totalorder %s29, 0
        %s336 = scalar_select %p335, %s29, 0
        %s337 = scalar_lea.vmem %s5, %s336
        %p338 = pneg %p177
        %p339 = pneg %p174
        %p340 = pneg %p205
        %p341 = pneg %p202
        %s342 = sand.u32 %s192, 1
        %s343 = scalar_lea.sflag [#allocation4], %s342
        %s344 = sand.u32 %s192, 1
        %s345 = smul.addr %s344, 256
        %s346 = scalar_lea.vmem [#allocation8], %s345
        %s347 = smul.u32 32, %s28
        %p348 = scmp.lt.s32.totalorder %s29, 0
        %s349 = scalar_select %p348, %s29, 0
        %s350 = scalar_lea.vmem %s4, %s349
        %p351 = scmp.lt.s32.totalorder %s29, 0
        %s352 = scalar_select %p351, %s29, 0
        %s353 = scalar_lea.vmem %s5, %s352
        %s354 = smul.u32 32, %s28
        %v355 = vld [vmem:[%s301] sm:$0xff]
        %v356 = vld [vmem:[%s301 + $0x8] sm:$0xff]
        %v357 = vld [vmem:[%s301 + $0x10] sm:$0xff]
        %v358 = vld [vmem:[%s301 + $0x18] sm:$0xff]
        %v359 = vld [vmem:[%s301 + $0x20] sm:$0xff]
        %v360 = vld [vmem:[%s301 + $0x28] sm:$0xff]
        %v361 = vld [vmem:[%s301 + $0x30] sm:$0xff]
        %v362 = vld [vmem:[%s301 + $0x38] sm:$0xff]
        %v363 = vld [vmem:[%s301 + $0x40] sm:$0xff]
        %v364 = vld [vmem:[%s301 + $0x48] sm:$0xff]
        %v365 = vld [vmem:[%s301 + $0x50] sm:$0xff]
        %v366 = vld [vmem:[%s301 + $0x58] sm:$0xff]
        %v367 = vld [vmem:[%s301 + $0x60] sm:$0xff]
        %v368 = vld [vmem:[%s301 + $0x68] sm:$0xff]
        %v369 = vld [vmem:[%s301 + $0x70] sm:$0xff]
        %v370 = vld [vmem:[%s301 + $0x78] sm:$0xff]
        %v371 = vld [vmem:[%s301 + $0x80] sm:$0xff]
        %v372 = vld [vmem:[%s301 + $0x88] sm:$0xff]
        %v373 = vld [vmem:[%s301 + $0x90] sm:$0xff]
        %v374 = vld [vmem:[%s301 + $0x98] sm:$0xff]
        %v375 = vld [vmem:[%s301 + $0xa0] sm:$0xff]
        %v376 = vld [vmem:[%s301 + $0xa8] sm:$0xff]
        %v377 = vld [vmem:[%s301 + $0xb0] sm:$0xff]
        %v378 = vld [vmem:[%s301 + $0xb8] sm:$0xff]
        %v379 = vld [vmem:[%s301 + $0xc0] sm:$0xff]
        %v380 = vld [vmem:[%s301 + $0xc8] sm:$0xff]
        %v381 = vld [vmem:[%s301 + $0xd0] sm:$0xff]
        %v382 = vld [vmem:[%s301 + $0xd8] sm:$0xff]
        %v383 = vld [vmem:[%s301 + $0xe0] sm:$0xff]
        %v384 = vld [vmem:[%s301 + $0xe8] sm:$0xff]
        %v385 = vld [vmem:[%s301 + $0xf0] sm:$0xff]
        %v386 = vld [vmem:[%s301 + $0xf8] sm:$0xff]
        %v387 = vld [vmem:[%s301 + $0x100] sm:$0xff]
        %v388 = vld [vmem:[%s301 + $0x108] sm:$0xff]
        %v389 = vld [vmem:[%s301 + $0x110] sm:$0xff]
        %v390 = vld [vmem:[%s301 + $0x118] sm:$0xff]
        %v391 = vld [vmem:[%s301 + $0x120] sm:$0xff]
        %v392 = vld [vmem:[%s301 + $0x128] sm:$0xff]
        %v393 = vld [vmem:[%s301 + $0x130] sm:$0xff]
        %v394 = vld [vmem:[%s301 + $0x138] sm:$0xff]
        %v395 = vld [vmem:[%s301 + $0x140] sm:$0xff]
        %v396 = vld [vmem:[%s301 + $0x148] sm:$0xff]
        %v397 = vld [vmem:[%s301 + $0x150] sm:$0xff]
        %v398 = vld [vmem:[%s301 + $0x158] sm:$0xff]
        %v399 = vld [vmem:[%s301 + $0x160] sm:$0xff]
        %v400 = vld [vmem:[%s301 + $0x168] sm:$0xff]
        %v401 = vld [vmem:[%s301 + $0x170] sm:$0xff]
        %v402 = vld [vmem:[%s301 + $0x178] sm:$0xff]
        %v403 = vld [vmem:[%s301 + $0x180] sm:$0xff]
        %v404 = vld [vmem:[%s301 + $0x188] sm:$0xff]
        %v405 = vld [vmem:[%s301 + $0x190] sm:$0xff]
        %v406 = vld [vmem:[%s301 + $0x198] sm:$0xff]
        %v407 = vld [vmem:[%s301 + $0x1a0] sm:$0xff]
        %v408 = vld [vmem:[%s301 + $0x1a8] sm:$0xff]
        %v409 = vld [vmem:[%s301 + $0x1b0] sm:$0xff]
        %v410 = vld [vmem:[%s301 + $0x1b8] sm:$0xff]
        %v411 = vld [vmem:[%s301 + $0x1c0] sm:$0xff]
        %v412 = vld [vmem:[%s301 + $0x1c8] sm:$0xff]
        %v413 = vld [vmem:[%s301 + $0x1d0] sm:$0xff]
        %v414 = vld [vmem:[%s301 + $0x1d8] sm:$0xff]
        %v415 = vld [vmem:[%s301 + $0x1e0] sm:$0xff]
        %v416 = vld [vmem:[%s301 + $0x1e8] sm:$0xff]
        %v417 = vld [vmem:[%s301 + $0x1f0] sm:$0xff]
        %v418 = vld [vmem:[%s301 + $0x1f8] sm:$0xff]
        %v419 = vld [vmem:[#allocation7] sm:$0x3]
        %v421 = vperm.slane %v419, 0
        %v422 = vperm.slane %v419, 1
        %v425 = vmul.f32 %v355, %v421
        %v426 = vmul.f32 %v356, %v422
        %v427 = vmul.f32 %v357, %v421
        %v428 = vmul.f32 %v358, %v422
        %v429 = vmul.f32 %v359, %v421
        %v430 = vmul.f32 %v360, %v422
        %v431 = vmul.f32 %v361, %v421
        %v432 = vmul.f32 %v362, %v422
        %v433 = vmul.f32 %v363, %v421
        %v434 = vmul.f32 %v364, %v422
        %v435 = vmul.f32 %v365, %v421
        %v436 = vmul.f32 %v366, %v422
        %v437 = vmul.f32 %v367, %v421
        %v438 = vmul.f32 %v368, %v422
        %v439 = vmul.f32 %v369, %v421
        %v440 = vmul.f32 %v370, %v422
        %v441 = vmul.f32 %v371, %v421
        %v442 = vmul.f32 %v372, %v422
        %v443 = vmul.f32 %v373, %v421
        %v444 = vmul.f32 %v374, %v422
        %v445 = vmul.f32 %v375, %v421
        %v446 = vmul.f32 %v376, %v422
        %v447 = vmul.f32 %v377, %v421
        %v448 = vmul.f32 %v378, %v422
        %v449 = vmul.f32 %v379, %v421
        %v450 = vmul.f32 %v380, %v422
        %v451 = vmul.f32 %v381, %v421
        %v452 = vmul.f32 %v382, %v422
        %v453 = vmul.f32 %v383, %v421
        %v454 = vmul.f32 %v384, %v422
        %v455 = vmul.f32 %v385, %v421
        %v456 = vmul.f32 %v386, %v422
        %v457 = vmul.f32 %v387, %v421
        %v458 = vmul.f32 %v388, %v422
        %v459 = vmul.f32 %v389, %v421
        %v460 = vmul.f32 %v390, %v422
        %v461 = vmul.f32 %v391, %v421
        %v462 = vmul.f32 %v392, %v422
        %v463 = vmul.f32 %v393, %v421
        %v464 = vmul.f32 %v394, %v422
        %v465 = vmul.f32 %v395, %v421
        %v466 = vmul.f32 %v396, %v422
        %v467 = vmul.f32 %v397, %v421
        %v468 = vmul.f32 %v398, %v422
        %v469 = vmul.f32 %v399, %v421
        %v470 = vmul.f32 %v400, %v422
        %v471 = vmul.f32 %v401, %v421
        %v472 = vmul.f32 %v402, %v422
        %v473 = vmul.f32 %v403, %v421
        %v474 = vmul.f32 %v404, %v422
        %v475 = vmul.f32 %v405, %v421
        %v476 = vmul.f32 %v406, %v422
        %v477 = vmul.f32 %v407, %v421
        %v478 = vmul.f32 %v408, %v422
        %v479 = vmul.f32 %v409, %v421
        %v480 = vmul.f32 %v410, %v422
        %v481 = vmul.f32 %v411, %v421
        %v482 = vmul.f32 %v412, %v422
        %v483 = vmul.f32 %v413, %v421
        %v484 = vmul.f32 %v414, %v422
        %v485 = vmul.f32 %v415, %v421
        %v486 = vmul.f32 %v416, %v422
        %v487 = vmul.f32 %v417, %v421
        %v488 = vmul.f32 %v418, %v422
        %v489 = vld [vmem:[%s3] sm:$0x3]
        %v491 = vperm.slane %v489, 0
        %v492 = vperm.slane %v489, 1
        %v495 = vadd.f32 %v425, %v491
        %v496 = vadd.f32 %v426, %v492
        %v497 = vadd.f32 %v427, %v491
        %v498 = vadd.f32 %v428, %v492
        %v499 = vadd.f32 %v429, %v491
        %v500 = vadd.f32 %v430, %v492
        %v501 = vadd.f32 %v431, %v491
        %v502 = vadd.f32 %v432, %v492
        %v503 = vadd.f32 %v433, %v491
        %v504 = vadd.f32 %v434, %v492
        %v505 = vadd.f32 %v435, %v491
        %v506 = vadd.f32 %v436, %v492
        %v507 = vadd.f32 %v437, %v491
        %v508 = vadd.f32 %v438, %v492
        %v509 = vadd.f32 %v439, %v491
        %v510 = vadd.f32 %v440, %v492
        %v511 = vadd.f32 %v441, %v491
        %v512 = vadd.f32 %v442, %v492
        %v513 = vadd.f32 %v443, %v491
        %v514 = vadd.f32 %v444, %v492
        %v515 = vadd.f32 %v445, %v491
        %v516 = vadd.f32 %v446, %v492
        %v517 = vadd.f32 %v447, %v491
        %v518 = vadd.f32 %v448, %v492
        %v519 = vadd.f32 %v449, %v491
        %v520 = vadd.f32 %v450, %v492
        %v521 = vadd.f32 %v451, %v491
        %v522 = vadd.f32 %v452, %v492
        %v523 = vadd.f32 %v453, %v491
        %v524 = vadd.f32 %v454, %v492
        %v525 = vadd.f32 %v455, %v491
        %v526 = vadd.f32 %v456, %v492
        %v527 = vadd.f32 %v457, %v491
        %v528 = vadd.f32 %v458, %v492
        %v529 = vadd.f32 %v459, %v491
        %v530 = vadd.f32 %v460, %v492
        %v531 = vadd.f32 %v461, %v491
        %v532 = vadd.f32 %v462, %v492
        %v533 = vadd.f32 %v463, %v491
        %v534 = vadd.f32 %v464, %v492
        %v535 = vadd.f32 %v465, %v491
        %v536 = vadd.f32 %v466, %v492
        %v537 = vadd.f32 %v467, %v491
        %v538 = vadd.f32 %v468, %v492
        %v539 = vadd.f32 %v469, %v491
        %v540 = vadd.f32 %v470, %v492
        %v541 = vadd.f32 %v471, %v491
        %v542 = vadd.f32 %v472, %v492
        %v543 = vadd.f32 %v473, %v491
        %v544 = vadd.f32 %v474, %v492
        %v545 = vadd.f32 %v475, %v491
        %v546 = vadd.f32 %v476, %v492
        %v547 = vadd.f32 %v477, %v491
        %v548 = vadd.f32 %v478, %v492
        %v549 = vadd.f32 %v479, %v491
        %v550 = vadd.f32 %v480, %v492
        %v551 = vadd.f32 %v481, %v491
        %v552 = vadd.f32 %v482, %v492
        %v553 = vadd.f32 %v483, %v491
        %v554 = vadd.f32 %v484, %v492
        %v555 = vadd.f32 %v485, %v491
        %v556 = vadd.f32 %v486, %v492
        %v557 = vadd.f32 %v487, %v491
        %v558 = vadd.f32 %v488, %v492
        %v559 = vpack.c.bf16 %v497, %v495
        %v560 = vpack.c.bf16 %v498, %v496
        %v561 = vpack.c.bf16 %v501, %v499
        %v562 = vpack.c.bf16 %v502, %v500
        %v563 = vpack.c.bf16 %v505, %v503
        %v564 = vpack.c.bf16 %v506, %v504
        %v565 = vpack.c.bf16 %v509, %v507
        %v566 = vpack.c.bf16 %v510, %v508
        %v567 = vpack.c.bf16 %v513, %v511
        %v568 = vpack.c.bf16 %v514, %v512
        %v569 = vpack.c.bf16 %v517, %v515
        %v570 = vpack.c.bf16 %v518, %v516
        %v571 = vpack.c.bf16 %v521, %v519
        %v572 = vpack.c.bf16 %v522, %v520
        %v573 = vpack.c.bf16 %v525, %v523
        %v574 = vpack.c.bf16 %v526, %v524
        %v575 = vpack.c.bf16 %v529, %v527
        %v576 = vpack.c.bf16 %v530, %v528
        %v577 = vpack.c.bf16 %v533, %v531
        %v578 = vpack.c.bf16 %v534, %v532
        %v579 = vpack.c.bf16 %v537, %v535
        %v580 = vpack.c.bf16 %v538, %v536
        %v581 = vpack.c.bf16 %v541, %v539
        %v582 = vpack.c.bf16 %v542, %v540
        %v583 = vpack.c.bf16 %v545, %v543
        %v584 = vpack.c.bf16 %v546, %v544
        %v585 = vpack.c.bf16 %v549, %v547
        %v586 = vpack.c.bf16 %v550, %v548
        %v587 = vpack.c.bf16 %v553, %v551
        %v588 = vpack.c.bf16 %v554, %v552
        %v589 = vpack.c.bf16 %v557, %v555
        %v590 = vpack.c.bf16 %v558, %v556
        %v591 = vld [vmem:[#allocation5] sm:$0xf]
        %v592 = vld [vmem:[#allocation5 + $0x4] sm:$0xf]
        %v593 = vld [vmem:[#allocation5 + $0x8] sm:$0xf]
        %v594 = vld [vmem:[#allocation5 + $0xc] sm:$0xf]
        %v595 = vld [vmem:[#allocation5 + $0x10] sm:$0xf]
        %v596 = vld [vmem:[#allocation5 + $0x14] sm:$0xf]
        %v597 = vld [vmem:[#allocation5 + $0x18] sm:$0xf]
        %v598 = vld [vmem:[#allocation5 + $0x1c] sm:$0xf]
        %v599 = vld [vmem:[#allocation5 + $0x20] sm:$0xf]
        %v600 = vld [vmem:[#allocation5 + $0x24] sm:$0xf]
        %v601 = vld [vmem:[#allocation5 + $0x28] sm:$0xf]
        %v602 = vld [vmem:[#allocation5 + $0x2c] sm:$0xf]
        %v603 = vld [vmem:[#allocation5 + $0x30] sm:$0xf]
        %v604 = vld [vmem:[#allocation5 + $0x34] sm:$0xf]
        %v605 = vld [vmem:[#allocation5 + $0x38] sm:$0xf]
        %v606 = vld [vmem:[#allocation5 + $0x3c] sm:$0xf]
        %v607 = vld [vmem:[#allocation5 + $0x40] sm:$0xf]
        %v608 = vld [vmem:[#allocation5 + $0x44] sm:$0xf]
        %v609 = vld [vmem:[#allocation5 + $0x48] sm:$0xf]
        %v610 = vld [vmem:[#allocation5 + $0x4c] sm:$0xf]
        %v611 = vld [vmem:[#allocation5 + $0x50] sm:$0xf]
        %v612 = vld [vmem:[#allocation5 + $0x54] sm:$0xf]
        %v613 = vld [vmem:[#allocation5 + $0x58] sm:$0xf]
        %v614 = vld [vmem:[#allocation5 + $0x5c] sm:$0xf]
        %v615 = vld [vmem:[#allocation5 + $0x60] sm:$0xf]
        %v616 = vld [vmem:[#allocation5 + $0x64] sm:$0xf]
        %v617 = vld [vmem:[#allocation5 + $0x68] sm:$0xf]
        %v618 = vld [vmem:[#allocation5 + $0x6c] sm:$0xf]
        %v619 = vld [vmem:[#allocation5 + $0x70] sm:$0xf]
        %v620 = vld [vmem:[#allocation5 + $0x74] sm:$0xf]
        %v621 = vld [vmem:[#allocation5 + $0x78] sm:$0xf]
        %v622 = vld [vmem:[#allocation5 + $0x7c] sm:$0xf]
        %v655 = vunpack.c.l.b16 %v591
        %v656 = vunpack.c.l.b16 %v592
        %v657 = vunpack.c.l.b16 %v593
        %v658 = vunpack.c.l.b16 %v594
        %v659 = vunpack.c.l.b16 %v595
        %v660 = vunpack.c.l.b16 %v596
        %v661 = vunpack.c.l.b16 %v597
        %v662 = vunpack.c.l.b16 %v598
        %v663 = vunpack.c.l.b16 %v599
        %v664 = vunpack.c.l.b16 %v600
        %v665 = vunpack.c.l.b16 %v601
        %v666 = vunpack.c.l.b16 %v602
        %v667 = vunpack.c.l.b16 %v603
        %v668 = vunpack.c.l.b16 %v604
        %v669 = vunpack.c.l.b16 %v605
        %v670 = vunpack.c.l.b16 %v606
        %v671 = vunpack.c.l.b16 %v607
        %v672 = vunpack.c.l.b16 %v608
        %v673 = vunpack.c.l.b16 %v609
        %v674 = vunpack.c.l.b16 %v610
        %v675 = vunpack.c.l.b16 %v611
        %v676 = vunpack.c.l.b16 %v612
        %v677 = vunpack.c.l.b16 %v613
        %v678 = vunpack.c.l.b16 %v614
        %v679 = vunpack.c.l.b16 %v615
        %v680 = vunpack.c.l.b16 %v616
        %v681 = vunpack.c.l.b16 %v617
        %v682 = vunpack.c.l.b16 %v618
        %v683 = vunpack.c.l.b16 %v619
        %v684 = vunpack.c.l.b16 %v620
        %v685 = vunpack.c.l.b16 %v621
        %v686 = vunpack.c.l.b16 %v622
        %v687 = vpack.c.b16 %v656, %v655
        %v688 = vpack.c.b16 %v658, %v657
        %v689 = vpack.c.b16 %v660, %v659
        %v690 = vpack.c.b16 %v662, %v661
        %v691 = vpack.c.b16 %v664, %v663
        %v692 = vpack.c.b16 %v666, %v665
        %v693 = vpack.c.b16 %v668, %v667
        %v694 = vpack.c.b16 %v670, %v669
        %v695 = vpack.c.b16 %v672, %v671
        %v696 = vpack.c.b16 %v674, %v673
        %v697 = vpack.c.b16 %v676, %v675
        %v698 = vpack.c.b16 %v678, %v677
        %v699 = vpack.c.b16 %v680, %v679
        %v700 = vpack.c.b16 %v682, %v681
        %v701 = vpack.c.b16 %v684, %v683
        %v702 = vpack.c.b16 %v686, %v685
        %719 = vmatpush.bf16.msra.mxu0 %v694
        %720 = vmatpush.bf16.msra.mxu0 %v693
        %721 = vmatpush.bf16.msra.mxu0 %v692
        %722 = vmatpush.bf16.msra.mxu0 %v691
        %723 = vmatpush.bf16.msra.mxu0 %v690
        %724 = vmatpush.bf16.msra.mxu0 %v689
        %725 = vmatpush.bf16.msra.mxu0 %v688
        %726 = vmatpush.bf16.msra.mxu0 %v687
        %727 = vmatmul.bf16.gmra.mxu0 %v559
        %v728 = vpop.f32.mrf.mxu0
        %v729 = vadd.f32 0.0, %v728
        %v730 = vpop.f32.mrf.mxu0
        %v731 = vadd.f32 0.0, %v730
        %732 = vmatmul.bf16.gmra.mxu0 %v561
        %v733 = vpop.f32.mrf.mxu0
        %v734 = vadd.f32 0.0, %v733
        %v735 = vpop.f32.mrf.mxu0
        %v736 = vadd.f32 0.0, %v735
        %737 = vmatmul.bf16.gmra.mxu0 %v563
        %v738 = vpop.f32.mrf.mxu0
        %v739 = vadd.f32 0.0, %v738
        %v740 = vpop.f32.mrf.mxu0
        %v741 = vadd.f32 0.0, %v740
        %742 = vmatmul.bf16.gmra.mxu0 %v565
        %v743 = vpop.f32.mrf.mxu0
        %v744 = vadd.f32 0.0, %v743
        %v745 = vpop.f32.mrf.mxu0
        %v746 = vadd.f32 0.0, %v745
        %747 = vmatmul.bf16.gmra.mxu0 %v567
        %v748 = vpop.f32.mrf.mxu0
        %v749 = vadd.f32 0.0, %v748
        %v750 = vpop.f32.mrf.mxu0
        %v751 = vadd.f32 0.0, %v750
        %752 = vmatmul.bf16.gmra.mxu0 %v569
        %v753 = vpop.f32.mrf.mxu0
        %v754 = vadd.f32 0.0, %v753
        %v755 = vpop.f32.mrf.mxu0
        %v756 = vadd.f32 0.0, %v755
        %757 = vmatmul.bf16.gmra.mxu0 %v571
        %v758 = vpop.f32.mrf.mxu0
        %v759 = vadd.f32 0.0, %v758
        %v760 = vpop.f32.mrf.mxu0
        %v761 = vadd.f32 0.0, %v760
        %762 = vmatmul.bf16.gmra.mxu0 %v573
        %v763 = vpop.f32.mrf.mxu0
        %v764 = vadd.f32 0.0, %v763
        %v765 = vpop.f32.mrf.mxu0
        %v766 = vadd.f32 0.0, %v765
        %767 = vmatmul.bf16.gmra.mxu0 %v575
        %v768 = vpop.f32.mrf.mxu0
        %v769 = vadd.f32 0.0, %v768
        %v770 = vpop.f32.mrf.mxu0
        %v771 = vadd.f32 0.0, %v770
        %772 = vmatmul.bf16.gmra.mxu0 %v577
        %v773 = vpop.f32.mrf.mxu0
        %v774 = vadd.f32 0.0, %v773
        %v775 = vpop.f32.mrf.mxu0
        %v776 = vadd.f32 0.0, %v775
        %777 = vmatmul.bf16.gmra.mxu0 %v579
        %v778 = vpop.f32.mrf.mxu0
        %v779 = vadd.f32 0.0, %v778
        %v780 = vpop.f32.mrf.mxu0
        %v781 = vadd.f32 0.0, %v780
        %782 = vmatmul.bf16.gmra.mxu0 %v581
        %v783 = vpop.f32.mrf.mxu0
        %v784 = vadd.f32 0.0, %v783
        %v785 = vpop.f32.mrf.mxu0
        %v786 = vadd.f32 0.0, %v785
        %787 = vmatmul.bf16.gmra.mxu0 %v583
        %v788 = vpop.f32.mrf.mxu0
        %v789 = vadd.f32 0.0, %v788
        %v790 = vpop.f32.mrf.mxu0
        %v791 = vadd.f32 0.0, %v790
        %792 = vmatmul.bf16.gmra.mxu0 %v585
        %v793 = vpop.f32.mrf.mxu0
        %v794 = vadd.f32 0.0, %v793
        %v795 = vpop.f32.mrf.mxu0
        %v796 = vadd.f32 0.0, %v795
        %797 = vmatmul.bf16.gmra.mxu0 %v587
        %v798 = vpop.f32.mrf.mxu0
        %v799 = vadd.f32 0.0, %v798
        %v800 = vpop.f32.mrf.mxu0
        %v801 = vadd.f32 0.0, %v800
        %802 = vmatmul.bf16.gmra.mxu0 %v589
        %v803 = vpop.f32.mrf.mxu0
        %v804 = vadd.f32 0.0, %v803
        %v805 = vpop.f32.mrf.mxu0
        %v806 = vadd.f32 0.0, %v805
        %807 = vdwg.mxu0
        %808 = vmatpush.bf16.msra.mxu0 %v702
        %809 = vmatpush.bf16.msra.mxu0 %v701
        %810 = vmatpush.bf16.msra.mxu0 %v700
        %811 = vmatpush.bf16.msra.mxu0 %v699
        %812 = vmatpush.bf16.msra.mxu0 %v698
        %813 = vmatpush.bf16.msra.mxu0 %v697
        %814 = vmatpush.bf16.msra.mxu0 %v696
        %815 = vmatpush.bf16.msra.mxu0 %v695
        %816 = vmatmul.bf16.gmra.mxu0 %v560
        %v817 = vpop.f32.mrf.mxu0
        %v818 = vadd.f32 %v729, %v817
        %v819 = vpop.f32.mrf.mxu0
        %v820 = vadd.f32 %v731, %v819
        %821 = vmatmul.bf16.gmra.mxu0 %v562
        %v822 = vpop.f32.mrf.mxu0
        %v823 = vadd.f32 %v734, %v822
        %v824 = vpop.f32.mrf.mxu0
        %v825 = vadd.f32 %v736, %v824
        %826 = vmatmul.bf16.gmra.mxu0 %v564
        %v827 = vpop.f32.mrf.mxu0
        %v828 = vadd.f32 %v739, %v827
        %v829 = vpop.f32.mrf.mxu0
        %v830 = vadd.f32 %v741, %v829
        %831 = vmatmul.bf16.gmra.mxu0 %v566
        %v832 = vpop.f32.mrf.mxu0
        %v833 = vadd.f32 %v744, %v832
        %v834 = vpop.f32.mrf.mxu0
        %v835 = vadd.f32 %v746, %v834
        %836 = vmatmul.bf16.gmra.mxu0 %v568
        %v837 = vpop.f32.mrf.mxu0
        %v838 = vadd.f32 %v749, %v837
        %v839 = vpop.f32.mrf.mxu0
        %v840 = vadd.f32 %v751, %v839
        %841 = vmatmul.bf16.gmra.mxu0 %v570
        %v842 = vpop.f32.mrf.mxu0
        %v843 = vadd.f32 %v754, %v842
        %v844 = vpop.f32.mrf.mxu0
        %v845 = vadd.f32 %v756, %v844
        %846 = vmatmul.bf16.gmra.mxu0 %v572
        %v847 = vpop.f32.mrf.mxu0
        %v848 = vadd.f32 %v759, %v847
        %v849 = vpop.f32.mrf.mxu0
        %v850 = vadd.f32 %v761, %v849
        %851 = vmatmul.bf16.gmra.mxu0 %v574
        %v852 = vpop.f32.mrf.mxu0
        %v853 = vadd.f32 %v764, %v852
        %v854 = vpop.f32.mrf.mxu0
        %v855 = vadd.f32 %v766, %v854
        %856 = vmatmul.bf16.gmra.mxu0 %v576
        %v857 = vpop.f32.mrf.mxu0
        %v858 = vadd.f32 %v769, %v857
        %v859 = vpop.f32.mrf.mxu0
        %v860 = vadd.f32 %v771, %v859
        %861 = vmatmul.bf16.gmra.mxu0 %v578
        %v862 = vpop.f32.mrf.mxu0
        %v863 = vadd.f32 %v774, %v862
        %v864 = vpop.f32.mrf.mxu0
        %v865 = vadd.f32 %v776, %v864
        %866 = vmatmul.bf16.gmra.mxu0 %v580
        %v867 = vpop.f32.mrf.mxu0
        %v868 = vadd.f32 %v779, %v867
        %v869 = vpop.f32.mrf.mxu0
        %v870 = vadd.f32 %v781, %v869
        %871 = vmatmul.bf16.gmra.mxu0 %v582
        %v872 = vpop.f32.mrf.mxu0
        %v873 = vadd.f32 %v784, %v872
        %v874 = vpop.f32.mrf.mxu0
        %v875 = vadd.f32 %v786, %v874
        %876 = vmatmul.bf16.gmra.mxu0 %v584
        %v877 = vpop.f32.mrf.mxu0
        %v878 = vadd.f32 %v789, %v877
        %v879 = vpop.f32.mrf.mxu0
        %v880 = vadd.f32 %v791, %v879
        %881 = vmatmul.bf16.gmra.mxu0 %v586
        %v882 = vpop.f32.mrf.mxu0
        %v883 = vadd.f32 %v794, %v882
        %v884 = vpop.f32.mrf.mxu0
        %v885 = vadd.f32 %v796, %v884
        %886 = vmatmul.bf16.gmra.mxu0 %v588
        %v887 = vpop.f32.mrf.mxu0
        %v888 = vadd.f32 %v799, %v887
        %v889 = vpop.f32.mrf.mxu0
        %v890 = vadd.f32 %v801, %v889
        %891 = vmatmul.bf16.gmra.mxu0 %v590
        %v892 = vpop.f32.mrf.mxu0
        %v893 = vadd.f32 %v804, %v892
        %v894 = vpop.f32.mrf.mxu0
        %v895 = vadd.f32 %v806, %v894
        %896 = vdwg.mxu0
        %v897 = vld [vmem:[%s350] sm:$0x1]
        %v899 = vperm.slane %v897, 0
        %v901 = vmul.f32 %v818, %v899
        %v902 = vmul.f32 %v820, %v899
        %v903 = vmul.f32 %v823, %v899
        %v904 = vmul.f32 %v825, %v899
        %v905 = vmul.f32 %v828, %v899
        %v906 = vmul.f32 %v830, %v899
        %v907 = vmul.f32 %v833, %v899
        %v908 = vmul.f32 %v835, %v899
        %v909 = vmul.f32 %v838, %v899
        %v910 = vmul.f32 %v840, %v899
        %v911 = vmul.f32 %v843, %v899
        %v912 = vmul.f32 %v845, %v899
        %v913 = vmul.f32 %v848, %v899
        %v914 = vmul.f32 %v850, %v899
        %v915 = vmul.f32 %v853, %v899
        %v916 = vmul.f32 %v855, %v899
        %v917 = vmul.f32 %v858, %v899
        %v918 = vmul.f32 %v860, %v899
        %v919 = vmul.f32 %v863, %v899
        %v920 = vmul.f32 %v865, %v899
        %v921 = vmul.f32 %v868, %v899
        %v922 = vmul.f32 %v870, %v899
        %v923 = vmul.f32 %v873, %v899
        %v924 = vmul.f32 %v875, %v899
        %v925 = vmul.f32 %v878, %v899
        %v926 = vmul.f32 %v880, %v899
        %v927 = vmul.f32 %v883, %v899
        %v928 = vmul.f32 %v885, %v899
        %v929 = vmul.f32 %v888, %v899
        %v930 = vmul.f32 %v890, %v899
        %v931 = vmul.f32 %v893, %v899
        %v932 = vmul.f32 %v895, %v899
        %v933 = vld [vmem:[%s353] sm:$0x1]
        %v935 = vperm.slane %v933, 0
        %v937 = vadd.f32 %v901, %v935
        %v938 = vadd.f32 %v902, %v935
        %v939 = vadd.f32 %v903, %v935
        %v940 = vadd.f32 %v904, %v935
        %v941 = vadd.f32 %v905, %v935
        %v942 = vadd.f32 %v906, %v935
        %v943 = vadd.f32 %v907, %v935
        %v944 = vadd.f32 %v908, %v935
        %v945 = vadd.f32 %v909, %v935
        %v946 = vadd.f32 %v910, %v935
        %v947 = vadd.f32 %v911, %v935
        %v948 = vadd.f32 %v912, %v935
        %v949 = vadd.f32 %v913, %v935
        %v950 = vadd.f32 %v914, %v935
        %v951 = vadd.f32 %v915, %v935
        %v952 = vadd.f32 %v916, %v935
        %v953 = vadd.f32 %v917, %v935
        %v954 = vadd.f32 %v918, %v935
        %v955 = vadd.f32 %v919, %v935
        %v956 = vadd.f32 %v920, %v935
        %v957 = vadd.f32 %v921, %v935
        %v958 = vadd.f32 %v922, %v935
        %v959 = vadd.f32 %v923, %v935
        %v960 = vadd.f32 %v924, %v935
        %v961 = vadd.f32 %v925, %v935
        %v962 = vadd.f32 %v926, %v935
        %v963 = vadd.f32 %v927, %v935
        %v964 = vadd.f32 %v928, %v935
        %v965 = vadd.f32 %v929, %v935
        %v966 = vadd.f32 %v930, %v935
        %v967 = vadd.f32 %v931, %v935
        %v968 = vadd.f32 %v932, %v935
        %v969 = vmax.f32 %v937, 0.0
        %v970 = vmax.f32 %v938, 0.0
        %v971 = vmax.f32 %v939, 0.0
        %v972 = vmax.f32 %v940, 0.0
        %v973 = vmax.f32 %v941, 0.0
        %v974 = vmax.f32 %v942, 0.0
        %v975 = vmax.f32 %v943, 0.0
        %v976 = vmax.f32 %v944, 0.0
        %v977 = vmax.f32 %v945, 0.0
        %v978 = vmax.f32 %v946, 0.0
        %v979 = vmax.f32 %v947, 0.0
        %v980 = vmax.f32 %v948, 0.0
        %v981 = vmax.f32 %v949, 0.0
        %v982 = vmax.f32 %v950, 0.0
        %v983 = vmax.f32 %v951, 0.0
        %v984 = vmax.f32 %v952, 0.0
        %v985 = vmax.f32 %v953, 0.0
        %v986 = vmax.f32 %v954, 0.0
        %v987 = vmax.f32 %v955, 0.0
        %v988 = vmax.f32 %v956, 0.0
        %v989 = vmax.f32 %v957, 0.0
        %v990 = vmax.f32 %v958, 0.0
        %v991 = vmax.f32 %v959, 0.0
        %v992 = vmax.f32 %v960, 0.0
        %v993 = vmax.f32 %v961, 0.0
        %v994 = vmax.f32 %v962, 0.0
        %v995 = vmax.f32 %v963, 0.0
        %v996 = vmax.f32 %v964, 0.0
        %v997 = vmax.f32 %v965, 0.0
        %v998 = vmax.f32 %v966, 0.0
        %v999 = vmax.f32 %v967, 0.0
        %v1000 = vmax.f32 %v968, 0.0
        %1001 = vst [vmem:[%s346] sm:$0xff] %v969
        %1002 = vst [vmem:[%s346 + $0x8] sm:$0xff] %v970
        %1003 = vst [vmem:[%s346 + $0x10] sm:$0xff] %v971
        %1004 = vst [vmem:[%s346 + $0x18] sm:$0xff] %v972
        %1005 = vst [vmem:[%s346 + $0x20] sm:$0xff] %v973
        %1006 = vst [vmem:[%s346 + $0x28] sm:$0xff] %v974
        %1007 = vst [vmem:[%s346 + $0x30] sm:$0xff] %v975
        %1008 = vst [vmem:[%s346 + $0x38] sm:$0xff] %v976
        %1009 = vst [vmem:[%s346 + $0x40] sm:$0xff] %v977
        %1010 = vst [vmem:[%s346 + $0x48] sm:$0xff] %v978
        %1011 = vst [vmem:[%s346 + $0x50] sm:$0xff] %v979
        %1012 = vst [vmem:[%s346 + $0x58] sm:$0xff] %v980
        %1013 = vst [vmem:[%s346 + $0x60] sm:$0xff] %v981
        %1014 = vst [vmem:[%s346 + $0x68] sm:$0xff] %v982
        %1015 = vst [vmem:[%s346 + $0x70] sm:$0xff] %v983
        %1016 = vst [vmem:[%s346 + $0x78] sm:$0xff] %v984
        %1017 = vst [vmem:[%s346 + $0x80] sm:$0xff] %v985
        %1018 = vst [vmem:[%s346 + $0x88] sm:$0xff] %v986
        %1019 = vst [vmem:[%s346 + $0x90] sm:$0xff] %v987
        %1020 = vst [vmem:[%s346 + $0x98] sm:$0xff] %v988
        %1021 = vst [vmem:[%s346 + $0xa0] sm:$0xff] %v989
        %1022 = vst [vmem:[%s346 + $0xa8] sm:$0xff] %v990
        %1023 = vst [vmem:[%s346 + $0xb0] sm:$0xff] %v991
        %1024 = vst [vmem:[%s346 + $0xb8] sm:$0xff] %v992
        %1025 = vst [vmem:[%s346 + $0xc0] sm:$0xff] %v993
        %1026 = vst [vmem:[%s346 + $0xc8] sm:$0xff] %v994
        %1027 = vst [vmem:[%s346 + $0xd0] sm:$0xff] %v995
        %1028 = vst [vmem:[%s346 + $0xd8] sm:$0xff] %v996
        %1029 = vst [vmem:[%s346 + $0xe0] sm:$0xff] %v997
        %1030 = vst [vmem:[%s346 + $0xe8] sm:$0xff] %v998
        %1031 = vst [vmem:[%s346 + $0xf0] sm:$0xff] %v999
        %1032 = vst [vmem:[%s346 + $0xf8] sm:$0xff] %v1000
        %s1033 = sand.u32 %s192, 1
        %s1034 = scalar_lea.sflag [#allocation4], %s1033
        %s1035 = sand.u32 %s192, 1
        %s1036 = smul.addr %s1035, 256
        %s1037 = scalar_lea.vmem [#allocation8], %s1036
        // Predicated region
        $region57: #{tpu_custom_call.1} parent=43 // pred_check
          %p1038 = pneg %p202
        $region58: #{tpu_custom_call.1} parent=43 // pred_check_branch
          %1040 = sbr.rel (%p1038) target = $region60
        $region59: #{tpu_custom_call.1} parent=43 // pred_region
          %s1041 = smul.u32 32, %s28
          %1043 = vsyncadd %s1034, 0
          %s1044 = sadd.s32 %s29, %s1041
          %s1045 = smul.addr %s1044, 8
          %s1046 = scalar_lea.hbm %s6, %s1045
          %s1047 = sshll.u32 %s1037, 4
          %s1048 = int_to_ptr.vmem [resolvable:$true] %s1047
          %s1049 = sshll.u32 %s1046, 4
          %s1050 = int_to_ptr.hbm [resolvable:$true] %s1049
          %1055 = dma.vmem_to_hbm [thread:$0]  %s1048, 4096, %s1050, %s1034, 128, 128, 8
        $region60: #{tpu_custom_call.1} parent=43 // pred_fallthru
          _
      $region44: #{tpu_custom_call.1} parent=5 // pred_fallthru
        _
      %p1056 = scmp.le.s32.totalorder 2, %s19
      // Predicated region
      $region61: #{tpu_custom_call.1} parent=5 // pred_check
        %p1057 = pneg %p1056
      $region62: #{tpu_custom_call.1} parent=5 // pred_check_branch
        %1059 = sbr.rel (%p1057) target = $region64
      $region63: #{tpu_custom_call.1} parent=5 // pred_region
        %s1060 = ssub.s32 %s19, 2
        // Predicated region
        $region65: #{tpu_custom_call.1} parent=63 // pred_check
          %p1061 = pneg %p208
        $region66: #{tpu_custom_call.1} parent=63 // pred_check_branch
          %1063 = sbr.rel (%p1061) target = $region68
        $region67: #{tpu_custom_call.1} parent=63 // pred_region
          %s1064 = sand.u32 %s193, 1
          %s1065 = scalar_lea.sflag [#allocation4], %s1064
          %s1066 = sand.u32 %s193, 1
          %s1067 = smul.addr %s1066, 256
          %s1068 = scalar_lea.vmem [#allocation8], %s1067
          %1070 = dma.done %s1065, 4096
        $region68: #{tpu_custom_call.1} parent=63 // pred_fallthru
          _
      $region64: #{tpu_custom_call.1} parent=5 // pred_fallthru
        _
    $region6: #{tpu_custom_call.1} parent=1 // loop_footer
      %s23 = sadd.s32 1, %s19
    $region7: #{tpu_custom_call.1} parent=1 // loop_footer_branch
      %18 = sbr.rel target = $region3
    $region8: #{tpu_custom_call.1} parent=1 // loop_exit
      _
    %1071 = vsyncpa [#allocation3], 1
    %s1072 = scalar_lea.sflag [#allocation3], 1
    %1073 = vsyncpa %s1072, 1
    %1074 = vsyncpa [#allocation6], 1
    %1075 = vsyncpa [#allocation4], 1
    %s1076 = scalar_lea.sflag [#allocation4], 1
    %1077 = vsyncpa %s1076, 1

</llo_original>
